<compile_context>
chip_gen: v6e
topology: v6e:2x2x1
jax: 0.10.0
libtpu: 0.0.40
codegen_flags: <defaults>
</compile_context>

<pallas_src>
import jax
import jax.numpy as jnp
from jax.experimental import pallas as pl
from jax.experimental.pallas import tpu as pltpu


def _learned_pos_emb_kernel(x_ref, wt_ref, o_ref):
    half = wt_ref.shape[1]
    # MXU: (TB, d_in) @ (d_in, half) -> (TB, half), f32 accumulate.
    f = (2.0 * jnp.pi) * jnp.dot(
        x_ref[...], wt_ref[...], preferred_element_type=jnp.float32
    )
    # EUP transcendentals; two direct slab stores into the output tile.
    o_ref[:, :half] = jnp.cos(f).astype(o_ref.dtype)
    o_ref[:, half:] = jnp.sin(f).astype(o_ref.dtype)


def learned_pos_emb(x, w, *, block_rows=1024, out_dtype=None):
    """x: (B, input_size) f32, w: (output_size//2, input_size) f32 (PyTorch layout)."""
    B, d_in = x.shape
    half, d_in2 = w.shape
    assert d_in == d_in2, "weight inner dim must match x feature dim"
    out_size = 2 * half
    out_dtype = x.dtype if out_dtype is None else out_dtype

    # Pre-transpose the parameter once (outside the kernel) -> (d_in, half),
    # so the kernel sees canonical (B, K) @ (K, N) with N lane-dense.
    wt = w.T

    # Batch tile: whole batch if it already fits a single tile, otherwise a
    # multiple-of-8 tile so blocks satisfy the (8, 128) alignment rule.
    if B <= block_rows:
        tb = B
    else:
        tb = max(block_rows - (block_rows % 8), 8)
    grid = (pl.cdiv(B, tb),)

    # VMEM budget: double-buffered x tile + double-buffered out tile + resident
    # W^T (+ slack). Clamped under v7x's 64 MiB per-TC VMEM.
    itemsize = 4
    vmem_bytes = (2 * tb * d_in + 2 * tb * out_size + 2 * d_in * half) * itemsize
    vmem_bytes = int(min(max(vmem_bytes + (1 << 20), 4 << 20), 48 << 20))

    cost = pl.CostEstimate(
        flops=2 * B * half * d_in + B * half,
        transcendentals=B * out_size,
        bytes_accessed=(B * d_in + d_in * half + B * out_size) * itemsize,
    )

    return pl.pallas_call(
        _learned_pos_emb_kernel,
        out_shape=jax.ShapeDtypeStruct((B, out_size), out_dtype),
        grid_spec=pl.GridSpec(
            grid=grid,
            in_specs=[
                pl.BlockSpec((tb, d_in), lambda i: (i, 0)),    # streamed x tiles
                pl.BlockSpec((d_in, half), lambda i: (0, 0)),  # resident W^T
            ],
            out_specs=pl.BlockSpec((tb, out_size), lambda i: (i, 0)),
        ),
        compiler_params=pltpu.CompilerParams(
            dimension_semantics=("parallel",),   # shard B-tiles across TCs (v7x)
            vmem_limit_bytes=vmem_bytes,
        ),
        cost_estimate=cost,
    )(x, wt)


def _reference(x, w):
    f = 2.0 * jnp.pi * (x @ w.T)
    return jnp.concatenate([jnp.cos(f), jnp.sin(f)], axis=-1)


if __name__ == "__main__":
    # Small shapes consistent with the module: batch=8, input_size=16,
    # output_size=64 (kernel param is (32, 16)).
    batch, input_size, output_size = 8, 16, 64
    half = output_size // 2

    key = jax.random.PRNGKey(0)
    kx, kw, kx2 = jax.random.split(key, 3)
    x = jax.random.normal(kx, (batch, input_size), dtype=jnp.float32)
    # Deterministic parameter init matching torch.randn(...) * 0.2 semantics.
    w = 0.2 * jax.random.normal(kw, (half, input_size), dtype=jnp.float32)

    out = jax.block_until_ready(learned_pos_emb(x, w))
    ref = _reference(x, w)
    assert out.shape == (batch, output_size)
    assert jnp.allclose(out, ref, atol=1e-5, rtol=1e-5)

    # Also exercise the tiled / pipelined multi-block path (several batch
    # tiles, including a ragged final tile).
    big_batch = 2048 + 40
    xb = jax.random.normal(kx2, (big_batch, input_size), dtype=jnp.float32)
    out_b = jax.block_until_ready(learned_pos_emb(xb, w, block_rows=512))
    ref_b = _reference(xb, w)
    assert out_b.shape == (big_batch, output_size)
    assert jnp.allclose(out_b, ref_b, atol=1e-5, rtol=1e-5)

    print("KERNEL_OK")
</pallas_src>

<mosaic_0001>
module attributes {stable_mosaic.version = 11 : i64} {
  func.func @_learned_pos_emb_kernel(%arg0: i32, %arg1: memref<8x16xf32, #tpu.memory_space<vmem>>, %arg2: memref<16x32xf32, #tpu.memory_space<vmem>>, %arg3: memref<8x64xf32, #tpu.memory_space<vmem>>) attributes {dimension_semantics = [#tpu.dimension_semantics<parallel>], iteration_bounds = array<i64: 1>, scalar_prefetch = 0 : i64, scratch_operands = 0 : i64, tpu.core_type = #tpu.core_type<tc>, window_params = [{transform_indices = @transform_0, window_bounds = array<i64: 8, 16>}, {pipeline_mode = #tpu.pipeline_mode<synchronous>, transform_indices = @transform_1, window_bounds = array<i64: 16, 32>}, {transform_indices = @transform_2, window_bounds = array<i64: 8, 64>}]} {
    %c0 = arith.constant 0 : index
    %c0_0 = arith.constant 0 : index
    %0 = vector.load %arg1[%c0, %c0_0] : memref<8x16xf32, #tpu.memory_space<vmem>>, vector<8x16xf32>
    %c0_1 = arith.constant 0 : index
    %c0_2 = arith.constant 0 : index
    %1 = vector.load %arg2[%c0_1, %c0_2] : memref<16x32xf32, #tpu.memory_space<vmem>>, vector<16x32xf32>
    %cst = arith.constant dense<0.000000e+00> : vector<8x32xf32>
    %2 = tpu.matmul %0, %1, %cst {dimension_numbers = #tpu.dot_dimension_numbers<[1], [0], [0], [1], [0, 0, 1, 1], [], []>} : vector<8x16xf32>, vector<16x32xf32>, vector<8x32xf32> -> vector<8x32xf32>
    %cst_3 = arith.constant 6.28318548 : f32
    %3 = vector.broadcast %cst_3 : f32 to vector<8x32xf32>
    %4 = arith.mulf %3, %2 : vector<8x32xf32>
    %5 = math.cos %4 : vector<8x32xf32>
    %c0_4 = arith.constant 0 : index
    %c0_5 = arith.constant 0 : index
    %6 = vector.load %arg3[%c0_4, %c0_5] : memref<8x64xf32, #tpu.memory_space<vmem>>, vector<8x32xf32>
    tpu.vector_store %arg3[%c0_4, %c0_5], %5 {strides = array<i32>} : memref<8x64xf32, #tpu.memory_space<vmem>>, vector<8x32xf32>,
    %7 = math.sin %4 : vector<8x32xf32>
    %c0_6 = arith.constant 0 : index
    %c32 = arith.constant 32 : index
    %8 = vector.load %arg3[%c0_6, %c32] : memref<8x64xf32, #tpu.memory_space<vmem>>, vector<8x32xf32>
    tpu.vector_store %arg3[%c0_6, %c32], %7 {strides = array<i32>} : memref<8x64xf32, #tpu.memory_space<vmem>>, vector<8x32xf32>,
    return
  }
  func.func @transform_0(%arg0: i32) -> (i32, i32) {
    %c0_i32 = arith.constant 0 : i32
    %c0_i32_0 = arith.constant 0 : i32
    return %arg0, %c0_i32 : i32, i32
  }
  func.func @transform_1(%arg0: i32) -> (i32, i32) {
    %c0_i32 = arith.constant 0 : i32
    %c0_i32_0 = arith.constant 0 : i32
    %c0_i32_1 = arith.constant 0 : i32
    return %c0_i32, %c0_i32_0 : i32, i32
  }
  func.func @transform_2(%arg0: i32) -> (i32, i32) {
    %c0_i32 = arith.constant 0 : i32
    %c0_i32_0 = arith.constant 0 : i32
    return %arg0, %c0_i32 : i32, i32
  }
}

</mosaic_0001>

<llo_original>
// kernel: tpu_custom_call.1
$region0: #{tpu_custom_call.1}
  #allocation0 [shape = 'u32[]', space=smem, size = 0x4, offset = 0x4, fixed_abs, tag = 'smem constant byte address 0x4 - core index']
  #allocation1 [shape = 'u32[144,128]{1,0:T(1,128)}', space=vmem, size = 0x12000, scoped, tag = 'internal scratch']
  %s0 = inlined_call_operand.hbm [shape: f32[8,16], index: 0, kind: input, shape index: {}]
  %s1 = inlined_call_operand.hbm [shape: f32[16,32], index: 1, kind: input, shape index: {}]
  %s2 = inlined_call_operand.hbm [shape: f32[8,64], index: 2, kind: output, shape index: {}]
  %s3 = sld [smem:[#allocation0]]
  $region26: #{tpu_custom_call.1} parent=0
    _
  %s5 = ssub.s32 1, %s3
  %s6 = scalar_select 0, %s5, %s3
  $region1: #{tpu_custom_call.1} parent=0
    #allocation2 [shape = 'u8[4096]{0}', space=vmem, size = 0x1000, scoped, tag = 'input window, operand 0, single buffered']
    #allocation3 [shape = 's32[1]{0}', space=sflag, size = 0x4, scoped, tag = 'scoped memory for tpu_custom_call.1']
    #allocation4 [shape = 's32[1]{0}', space=sflag, size = 0x4, scoped, tag = 'scoped memory for tpu_custom_call.1']
    #allocation5 [shape = 'u8[8192]{0}', space=vmem, size = 0x2000, scoped, tag = 'input window, operand 1, single buffered']
    #allocation6 [shape = 's32[1]{0}', space=sflag, size = 0x4, scoped, tag = 'scoped memory for tpu_custom_call.1']
    #allocation7 [shape = 'u8[4096]{0}', space=vmem, size = 0x1000, scoped, tag = 'output window, operand 0, single buffered']
    %7 = vsyncpa [#allocation3], 0
    %8 = vsyncpa [#allocation6], 0
    %9 = vsyncpa [#allocation4], 0
    // Predicated region
    $region2: #{tpu_custom_call.1} parent=1 // pred_check
      _
    $region3: #{tpu_custom_call.1} parent=1 // pred_check_branch
      %11 = sbr.rel (0) target = $region5
    $region4: #{tpu_custom_call.1} parent=1 // pred_region
      %s13 = ssub.s32 128, 128
      %14 = vsyncadd [#allocation3], %s13
      %s16 = sshll.u32 [#allocation2], 4
      %s17 = int_to_ptr.vmem [resolvable:$true] %s16
      %19 = dma.hbm_to_vmem [thread:$0]  %s0, 128, %s17, [#allocation3]
    $region5: #{tpu_custom_call.1} parent=1 // pred_fallthru
      _
    // Predicated region
    $region6: #{tpu_custom_call.1} parent=1 // pred_check
      _
    $region7: #{tpu_custom_call.1} parent=1 // pred_check_branch
      %21 = sbr.rel (0) target = $region9
    $region8: #{tpu_custom_call.1} parent=1 // pred_region
      %s23 = ssub.s32 256, 256
      %24 = vsyncadd [#allocation6], %s23
      %s25 = sshll.u32 [#allocation5], 4
      %s26 = int_to_ptr.vmem [resolvable:$true] %s25
      %31 = dma.hbm_to_vmem [thread:$0]  %s1, 256, %s26, [#allocation6], 128, 128, 8
    $region9: #{tpu_custom_call.1} parent=1 // pred_fallthru
      _
    // Predicated region
    $region10: #{tpu_custom_call.1} parent=1 // pred_check
      _
    $region11: #{tpu_custom_call.1} parent=1 // pred_check_branch
      %33 = sbr.rel (0) target = $region13
    $region12: #{tpu_custom_call.1} parent=1 // pred_region
      %34 = dma.done [#allocation3], 128
    $region13: #{tpu_custom_call.1} parent=1 // pred_fallthru
      _
    // Predicated region
    $region14: #{tpu_custom_call.1} parent=1 // pred_check
      _
    $region15: #{tpu_custom_call.1} parent=1 // pred_check_branch
      %36 = sbr.rel (0) target = $region17
    $region16: #{tpu_custom_call.1} parent=1 // pred_region
      %37 = dma.done [#allocation6], 256
    $region17: #{tpu_custom_call.1} parent=1 // pred_fallthru
      _
    %v38 = vld [vmem:[#allocation2] sm:$0xff]
    %v39 = vld [vmem:[#allocation5] sm:$0xff]
    %v40 = vld [vmem:[#allocation5 + $0x8] sm:$0xff]
    %vm41 = vcmask 130048
    %v43 = vsel %vm41, %v38, 0
    %45 = vmatprep.subr.mxu0 0.0
    %46 = vmatpush1.msra.mxu0 0.0
    %47 = vmatprep.subr.mxu0 0.0
    %48 = vmatpush1.msra.mxu0 0.0
    %49 = vmatprep.subr.mxu0 0.0
    %50 = vmatpush1.msra.mxu0 0.0
    %51 = vmatprep.subr.mxu0 0.0
    %52 = vmatpush1.msra.mxu0 0.0
    %53 = vmatprep.subr.mxu0 0.0
    %54 = vmatpush1.msra.mxu0 0.0
    %55 = vmatprep.subr.mxu0 0.0
    %56 = vmatpush1.msra.mxu0 0.0
    %57 = vmatprep.subr.mxu0 0.0
    %58 = vmatpush1.msra.mxu0 0.0
    %59 = vmatprep.subr.mxu0 0.0
    %60 = vmatpush1.msra.mxu0 0.0
    %61 = vmatprep.subr.mxu0 0.0
    %62 = vmatpush1.msra.mxu0 0.0
    %63 = vmatprep.subr.mxu0 0.0
    %64 = vmatpush1.msra.mxu0 0.0
    %65 = vmatprep.subr.mxu0 0.0
    %66 = vmatpush1.msra.mxu0 0.0
    %67 = vmatprep.subr.mxu0 0.0
    %68 = vmatpush1.msra.mxu0 0.0
    %69 = vmatprep.subr.mxu0 0.0
    %70 = vmatpush1.msra.mxu0 0.0
    %71 = vmatprep.subr.mxu0 0.0
    %72 = vmatpush1.msra.mxu0 0.0
    %73 = vmatprep.subr.mxu0 0.0
    %74 = vmatpush1.msra.mxu0 %v40
    %75 = vmatprep.subr.mxu0 0.0
    %76 = vmatpush1.msra.mxu0 %v39
    %77 = vmatprep.subr.mxu0 0.0
    %78 = vmatpush2.msra.mxu0 0.0
    %79 = vmatprep.subr.mxu0 0.0
    %80 = vmatpush2.msra.mxu0 0.0
    %81 = vmatprep.subr.mxu0 0.0
    %82 = vmatpush2.msra.mxu0 0.0
    %83 = vmatprep.subr.mxu0 0.0
    %84 = vmatpush2.msra.mxu0 0.0
    %85 = vmatprep.subr.mxu0 0.0
    %86 = vmatpush2.msra.mxu0 0.0
    %87 = vmatprep.subr.mxu0 0.0
    %88 = vmatpush2.msra.mxu0 0.0
    %89 = vmatprep.subr.mxu0 0.0
    %90 = vmatpush2.msra.mxu0 0.0
    %91 = vmatprep.subr.mxu0 0.0
    %92 = vmatpush2.msra.mxu0 0.0
    %93 = vmatprep.subr.mxu0 0.0
    %94 = vmatpush2.msra.mxu0 0.0
    %95 = vmatprep.subr.mxu0 0.0
    %96 = vmatpush2.msra.mxu0 0.0
    %97 = vmatprep.subr.mxu0 0.0
    %98 = vmatpush2.msra.mxu0 0.0
    %99 = vmatprep.subr.mxu0 0.0
    %100 = vmatpush2.msra.mxu0 0.0
    %101 = vmatprep.subr.mxu0 0.0
    %102 = vmatpush2.msra.mxu0 0.0
    %103 = vmatprep.subr.mxu0 0.0
    %104 = vmatpush2.msra.mxu0 0.0
    %105 = vmatprep.subr.mxu0 0.0
    %106 = vmatpush2.msra.mxu0 0.0
    %107 = vmatprep.subr.mxu0 0.0
    %108 = vmatpush2.msra.mxu0 0.0
    %109 = vmatprep.mubr.f32.mxu0 0.0
    %110 = vmatmul.mubr.f32.gmra.mxu0 %v43
    %v111 = vpop.f32.mrf.mxu0
    %v112 = vadd.f32 0.0, %v111
    %v113 = vpop.f32.mrf.mxu0
    %114 = vdwg.mxu0
    %v115 = vmul.f32 %v112, 6.2831855
    %v116 = vand.u32 2147483647, %v115
    %vm117 = vcmp.le.f32.partialorder %v116, 0.7853982
    %vm118 = vcmp.lt.s32.totalorder %v115, 0
    %v119 = vand.u32 %v115, 2139095040
    %v120 = vshrl.u32 %v119, 23
    %v121 = vsub.s32 %v120, 127
    %v122 = vand.u32 2147483647, %v115
    %v123 = vand.u32 %v122, 8388607
    %v124 = vor.u32 %v123, 8388608
    %v125 = vsub.s32 0, %v124
    %v126 = vadd.s32 %v121, 1
    %vm127 = vcmp.gt.s32.totalorder %v126, 0
    %v128 = vsel %vm127, %v126, 0
    %v129 = vshrl.u32 %v128, 5
    %v130 = vand.u32 %v128, 31
    %v131 = vsub.s32 32, %v130
    %v132 = vshrl.u32 683565275, %v131
    %v133 = vshll.u32 683565275, %v130
    %v134 = vshrl.u32 2475754826, %v131
    %v135 = vor.u32 %v133, %v134
    %v136 = vshll.u32 2475754826, %v130
    %v137 = vshrl.u32 2131351028, %v131
    %v138 = vor.u32 %v136, %v137
    %v139 = vshll.u32 2131351028, %v130
    %v140 = vshrl.u32 2102212464, %v131
    %v141 = vor.u32 %v139, %v140
    %v142 = vshll.u32 2102212464, %v130
    %v143 = vshrl.u32 920167782, %v131
    %v144 = vor.u32 %v142, %v143
    %v145 = vshll.u32 920167782, %v130
    %v146 = vshrl.u32 1326507024, %v131
    %v147 = vor.u32 %v145, %v146
    %vm148 = vcmp.lt.s32.totalorder %v129, 1
    %vm149 = vcmp.lt.s32.totalorder %v129, 2
    %vm150 = vcmp.lt.s32.totalorder %v129, 3
    %vm151 = vcmp.lt.s32.totalorder %v129, 4
    %v152 = vsel %vm148, %v132, %v135
    %v153 = vsel %vm151, %v141, 2102212464
    %v154 = vsel %vm150, %v138, %v153
    %v155 = vsel %vm149, %v152, %v154
    %v156 = vsel %vm148, %v135, %v138
    %v157 = vsel %vm151, %v144, 920167782
    %v158 = vsel %vm150, %v141, %v157
    %v159 = vsel %vm149, %v156, %v158
    %v160 = vsel %vm148, %v138, %v141
    %v161 = vsel %vm151, %v147, 1326507024
    %v162 = vsel %vm150, %v144, %v161
    %v163 = vsel %vm149, %v160, %v162
    %v164 = vshll.u32 %v124, 8
    %v165 = vmul.u32.u64.compose %v164, %v163
    %v166 = vextract.low.u32 %v165
    %v167 = vextract.high.u32 %v165
    %v168 = vmul.u32.u64.compose %v164, %v159
    %v169 = vextract.low.u32 %v168
    %v170 = vextract.high.u32 %v168
    %v171 = vmul.u32 %v164, %v155
    %v172 = vadd.s32 %v167, %v169
    %vm173 = vc.u32 %v167, %v169
    %v174 = vadd.s32 %v170, 1
    %v175 = vsel %vm173, %v174, %v170
    %v176 = vadd.s32 %v171, %v175
    %v177 = vadd.s32 %v176, 536870912
    %v178 = vshrl.u32 %v177, 30
    %v179 = vshll.u32 %v178, 30
    %v180 = vsub.s32 %v176, %v179
    %vm181 = vcmp.lt.s32.totalorder %v180, 0
    %v182 = vsub.s32 0, %v180
    %v183 = vsel %vm181, %v182, %v180
    %v184 = vclz %v183
    %v185 = vsub.s32 %v184, 2
    %vm186 = vcmp.gt.s32.totalorder 0, %v185
    %v187 = vsel %vm186, 0, %v185
    %v188 = vsub.s32 32, %v187
    %v189 = vshll.u32 %v180, %v187
    %v190 = vshrl.u32 %v172, %v188
    %v191 = vor.u32 %v189, %v190
    %v192 = vsub.s32 4294967266, %v187
    %v193 = vadd.s32 %v192, 127
    %v194 = vshll.u32 %v193, 23
    %v195 = vor.u32 4788187, %v194
    %v196 = vand.u32 2147483647, %v195
    %v198 = vcvt.s32.f32 %v191
    %v199 = vmul.f32 %v198, %v196
    %v200 = vxor.u32 %v199, 2147483648
    %v201 = vsel %vm118, %v200, %v199
    %v202 = vsub.s32 4, %v178
    %v203 = vsel %vm118, %v202, %v178
    %v204 = vsel %vm117, %v115, %v201
    %v205 = vsel %vm117, 0, %v203
    %v206 = vcosq.f32.pop %v204
    %v207 = vsinq.f32.pop %v204
    %vm208 = vweird.f32 %v115
    %v209 = vand.u32 %v205, 3
    %vm210 = vcmp.lt.s32.totalorder %v209, 2
    %vm211 = vcmp.eq.s32.totalorder %v209, 0
    %v212 = vxor.u32 %v207, 2147483648
    %v213 = vsel %vm211, %v206, %v212
    %vm214 = vcmp.eq.s32.totalorder %v209, 2
    %v215 = vxor.u32 %v206, 2147483648
    %v216 = vsel %vm214, %v215, %v207
    %v217 = vsel %vm210, %v213, %v216
    %v218 = vsel %vm208, nan, %v217
    %vm219 = vcmask 261120
    %220 = vst.msk [vmem:[#allocation7] sm:$0xff] %vm219, %v218
    %v221 = vand.u32 2147483647, %v115
    %vm222 = vcmp.le.f32.partialorder %v221, 0.7853982
    %vm223 = vcmp.lt.s32.totalorder %v115, 0
    %v224 = vand.u32 %v115, 2139095040
    %v225 = vshrl.u32 %v224, 23
    %v226 = vsub.s32 %v225, 127
    %v227 = vand.u32 2147483647, %v115
    %v228 = vand.u32 %v227, 8388607
    %v229 = vor.u32 %v228, 8388608
    %v230 = vsub.s32 0, %v229
    %v231 = vadd.s32 %v226, 1
    %vm232 = vcmp.gt.s32.totalorder %v231, 0
    %v233 = vsel %vm232, %v231, 0
    %v234 = vshrl.u32 %v233, 5
    %v235 = vand.u32 %v233, 31
    %v236 = vsub.s32 32, %v235
    %v237 = vshrl.u32 683565275, %v236
    %v238 = vshll.u32 683565275, %v235
    %v239 = vshrl.u32 2475754826, %v236
    %v240 = vor.u32 %v238, %v239
    %v241 = vshll.u32 2475754826, %v235
    %v242 = vshrl.u32 2131351028, %v236
    %v243 = vor.u32 %v241, %v242
    %v244 = vshll.u32 2131351028, %v235
    %v245 = vshrl.u32 2102212464, %v236
    %v246 = vor.u32 %v244, %v245
    %v247 = vshll.u32 2102212464, %v235
    %v248 = vshrl.u32 920167782, %v236
    %v249 = vor.u32 %v247, %v248
    %v250 = vshll.u32 920167782, %v235
    %v251 = vshrl.u32 1326507024, %v236
    %v252 = vor.u32 %v250, %v251
    %vm253 = vcmp.lt.s32.totalorder %v234, 1
    %vm254 = vcmp.lt.s32.totalorder %v234, 2
    %vm255 = vcmp.lt.s32.totalorder %v234, 3
    %vm256 = vcmp.lt.s32.totalorder %v234, 4
    %v257 = vsel %vm253, %v237, %v240
    %v258 = vsel %vm256, %v246, 2102212464
    %v259 = vsel %vm255, %v243, %v258
    %v260 = vsel %vm254, %v257, %v259
    %v261 = vsel %vm253, %v240, %v243
    %v262 = vsel %vm256, %v249, 920167782
    %v263 = vsel %vm255, %v246, %v262
    %v264 = vsel %vm254, %v261, %v263
    %v265 = vsel %vm253, %v243, %v246
    %v266 = vsel %vm256, %v252, 1326507024
    %v267 = vsel %vm255, %v249, %v266
    %v268 = vsel %vm254, %v265, %v267
    %v269 = vshll.u32 %v229, 8
    %v270 = vmul.u32.u64.compose %v269, %v268
    %v271 = vextract.low.u32 %v270
    %v272 = vextract.high.u32 %v270
    %v273 = vmul.u32.u64.compose %v269, %v264
    %v274 = vextract.low.u32 %v273
    %v275 = vextract.high.u32 %v273
    %v276 = vmul.u32 %v269, %v260
    %v277 = vadd.s32 %v272, %v274
    %vm278 = vc.u32 %v272, %v274
    %v279 = vadd.s32 %v275, 1
    %v280 = vsel %vm278, %v279, %v275
    %v281 = vadd.s32 %v276, %v280
    %v282 = vadd.s32 %v281, 536870912
    %v283 = vshrl.u32 %v282, 30
    %v284 = vshll.u32 %v283, 30
    %v285 = vsub.s32 %v281, %v284
    %vm286 = vcmp.lt.s32.totalorder %v285, 0
    %v287 = vsub.s32 0, %v285
    %v288 = vsel %vm286, %v287, %v285
    %v289 = vclz %v288
    %v290 = vsub.s32 %v289, 2
    %vm291 = vcmp.gt.s32.totalorder 0, %v290
    %v292 = vsel %vm291, 0, %v290
    %v293 = vsub.s32 32, %v292
    %v294 = vshll.u32 %v285, %v292
    %v295 = vshrl.u32 %v277, %v293
    %v296 = vor.u32 %v294, %v295
    %v297 = vsub.s32 4294967266, %v292
    %v298 = vadd.s32 %v297, 127
    %v299 = vshll.u32 %v298, 23
    %v300 = vor.u32 4788187, %v299
    %v301 = vand.u32 2147483647, %v300
    %v303 = vcvt.s32.f32 %v296
    %v304 = vmul.f32 %v303, %v301
    %v305 = vxor.u32 %v304, 2147483648
    %v306 = vsel %vm223, %v305, %v304
    %v307 = vsub.s32 4, %v283
    %v308 = vsel %vm223, %v307, %v283
    %v309 = vsel %vm222, %v115, %v306
    %v310 = vsel %vm222, 0, %v308
    %v311 = vcosq.f32.pop %v309
    %v312 = vsinq.f32.pop %v309
    %vm313 = vweird.f32 %v115
    %v314 = vadd.s32 %v310, 3
    %v315 = vand.u32 %v314, 3
    %vm316 = vcmp.lt.s32.totalorder %v315, 2
    %vm317 = vcmp.eq.s32.totalorder %v315, 0
    %v318 = vxor.u32 %v312, 2147483648
    %v319 = vsel %vm317, %v311, %v318
    %vm320 = vcmp.eq.s32.totalorder %v315, 2
    %v321 = vxor.u32 %v311, 2147483648
    %v322 = vsel %vm320, %v321, %v312
    %v323 = vsel %vm316, %v319, %v322
    %v324 = vsel %vm313, nan, %v323
    %326 = vrot.lane.b32.xlu0 %v324, 32
    %v327 = vpop.permute.xlu0 %326
    %vm329 = vcmask 523520
    %330 = vst.msk [vmem:[#allocation7] sm:$0xff] %vm329, %v327
    // Predicated region
    $region18: #{tpu_custom_call.1} parent=1 // pred_check
      _
    $region19: #{tpu_custom_call.1} parent=1 // pred_check_branch
      %332 = sbr.rel (0) target = $region21
    $region20: #{tpu_custom_call.1} parent=1 // pred_region
      %s334 = ssub.s32 128, 128
      %335 = vsyncadd [#allocation4], %s334
      %s337 = sshll.u32 [#allocation7], 4
      %s338 = int_to_ptr.vmem [resolvable:$true] %s337
      %340 = dma.vmem_to_hbm [thread:$0]  %s338, 128, %s2, [#allocation4]
    $region21: #{tpu_custom_call.1} parent=1 // pred_fallthru
      _
    // Predicated region
    $region22: #{tpu_custom_call.1} parent=1 // pred_check
      _
    $region23: #{tpu_custom_call.1} parent=1 // pred_check_branch
      %342 = sbr.rel (0) target = $region25
    $region24: #{tpu_custom_call.1} parent=1 // pred_region
      %343 = dma.done [#allocation4], 128
    $region25: #{tpu_custom_call.1} parent=1 // pred_fallthru
      _
    %344 = vsyncpa [#allocation3], 1
    %345 = vsyncpa [#allocation6], 1
    %346 = vsyncpa [#allocation4], 1

</llo_original>
